<compile_context>
chip_gen: v7x
topology: tpu7x:2x2x1
jax: 0.10.0
libtpu: 0.0.40
codegen_flags: <defaults>
</compile_context>

<pallas_src>
import functools

import jax
import jax.numpy as jnp
from jax.experimental import pallas as pl
from jax.experimental.pallas import tpu as pltpu

EPS = 1e-5
NEG_SLOPE = 0.01  # nn.LeakyReLU default


def _round_up(x, m):
    return ((x + m - 1) // m) * m


def _leaky_relu(x):
    return jnp.where(x >= 0, x, NEG_SLOPE * x)


def simple_dnn_kernel(x_ref,
                      w1_ref, b1_ref,
                      w2_ref, b2_ref,
                      w3_ref, b3_ref,
                      o_ref):
    # x tile: (TB, indim) bf16.  Weights: bf16.  Biases + all elementwise math: f32.
    x = x_ref[...]

    # ln1 (+ folded bn1): (TB, indim) @ (indim, 128), f32 accumulate.
    h = jnp.dot(x, w1_ref[...], preferred_element_type=jnp.float32) + b1_ref[...]
    # dropout (p=0.4): identity at inference.
    h = _leaky_relu(h)

    # ln2 (+ folded bn2): (TB, 128) @ (128, 256).
    h = jnp.dot(h.astype(jnp.bfloat16), w2_ref[...],
                preferred_element_type=jnp.float32) + b2_ref[...]
    # dropout: identity at inference.
    h = _leaky_relu(h)

    # ln4: (TB, 256) @ (256, 2).
    logits = jnp.dot(h.astype(jnp.bfloat16), w3_ref[...],
                     preferred_element_type=jnp.float32) + b3_ref[...]

    # softmax over dim=1 (numerically stable, f32).
    m = jnp.max(logits, axis=1, keepdims=True)
    e = jnp.exp(logits - m)
    o_ref[...] = (e / jnp.sum(e, axis=1, keepdims=True)).astype(o_ref.dtype)


@functools.partial(jax.jit, static_argnames=("batch_tile",))
def simple_dnn_forward(x, prepped, *, batch_tile=512):
    """x: (B, indim) float32. prepped: BN-folded params from prepare_params()."""
    B, indim = x.shape

    # Batch tile: multiple of 8 (f32 sublane alignment), capped by the padded batch.
    TB = min(batch_tile, _round_up(B, 8))
    B_pad = _round_up(B, TB)
    if B_pad != B:
        x = jnp.pad(x, ((0, B_pad - B), (0, 0)))
    x_bf16 = x.astype(jnp.bfloat16)  # halve the x DMA; accumulate stays f32 in-kernel.

    w1, b1 = prepped["w1"], prepped["b1"]
    w2, b2 = prepped["w2"], prepped["b2"]
    w3, b3 = prepped["w3"], prepped["b3"]

    const = lambda i: (0, 0)  # weights/biases: same block every grid step -> resident in VMEM.

    out = pl.pallas_call(
        simple_dnn_kernel,
        out_shape=jax.ShapeDtypeStruct((B_pad, 2), jnp.float32),
        grid_spec=pltpu.PrefetchScalarGridSpec(
            num_scalar_prefetch=0,
            grid=(B_pad // TB,),
            in_specs=[
                pl.BlockSpec((TB, indim), lambda i: (i, 0)),   # x tile, pipelined
                pl.BlockSpec(w1.shape, const),
                pl.BlockSpec(b1.shape, const),
                pl.BlockSpec(w2.shape, const),
                pl.BlockSpec(b2.shape, const),
                pl.BlockSpec(w3.shape, const),
                pl.BlockSpec(b3.shape, const),
            ],
            out_specs=pl.BlockSpec((TB, 2), lambda i: (i, 0)),
        ),
        compiler_params=pltpu.CompilerParams(
            dimension_semantics=("parallel",),   # v7x: shard batch tiles across both TCs
        ),
    )(x_bf16, w1, b1, w2, b2, w3, b3)

    return out[:B]


def prepare_params(params):
    """Fold eval-mode BatchNorms into the preceding Linears, cast weights to bf16.

    Done ONCE outside the kernel; biases stay f32.
    """
    f32 = jnp.float32

    s1 = params["g1"].astype(f32) * jax.lax.rsqrt(params["v1"].astype(f32) + EPS)
    w1 = (params["w1"].astype(f32) * s1).astype(jnp.bfloat16)          # (indim,128)
    b1 = (params["b1"].astype(f32) - params["m1"]) * s1 + params["be1"]  # (1,128)

    s2 = params["g2"].astype(f32) * jax.lax.rsqrt(params["v2"].astype(f32) + EPS)
    w2 = (params["w2"].astype(f32) * s2).astype(jnp.bfloat16)          # (128,256)
    b2 = (params["b2"].astype(f32) - params["m2"]) * s2 + params["be2"]  # (1,256)

    w3 = params["w3"].astype(jnp.bfloat16)                              # (256,2)
    b3 = params["b3"].astype(f32)                                       # (1,2)

    return dict(w1=w1, b1=b1, w2=w2, b2=b2, w3=w3, b3=b3)


def init_params(key, indim):
    """Deterministic synthetic parameters matching the nn.Module shapes."""
    ks = jax.random.split(key, 8)
    f32 = jnp.float32

    def lin(k, fan_in, fan_out):
        kw, kb = jax.random.split(k)
        bound = 1.0 / (fan_in ** 0.5)
        w = jax.random.uniform(kw, (fan_in, fan_out), f32, -bound, bound)
        b = jax.random.uniform(kb, (1, fan_out), f32, -bound, bound)
        return w, b

    def bn(k, n):
        kg, kb, km, kv = jax.random.split(k, 4)
        gamma = 1.0 + 0.1 * jax.random.normal(kg, (1, n), f32)
        beta = 0.1 * jax.random.normal(kb, (1, n), f32)
        mean = 0.1 * jax.random.normal(km, (1, n), f32)
        var = 1.0 + 0.1 * jnp.abs(jax.random.normal(kv, (1, n), f32))
        return gamma, beta, mean, var

    w1, b1 = lin(ks[0], indim, 128)
    g1, be1, m1, v1 = bn(ks[1], 128)
    w2, b2 = lin(ks[2], 128, 256)
    g2, be2, m2, v2 = bn(ks[3], 256)
    w3, b3 = lin(ks[4], 256, 2)

    return dict(w1=w1, b1=b1, g1=g1, be1=be1, m1=m1, v1=v1,
                w2=w2, b2=b2, g2=g2, be2=be2, m2=m2, v2=v2,
                w3=w3, b3=b3)


def reference_forward(x, params):
    """Pure-JAX f32 reference (eval-mode PyTorch semantics)."""
    def bn(h, g, be, m, v):
        return (h - m) * jax.lax.rsqrt(v + EPS) * g + be

    h = x @ params["w1"] + params["b1"]
    h = bn(h, params["g1"], params["be1"], params["m1"], params["v1"])
    h = jnp.where(h >= 0, h, NEG_SLOPE * h)
    h = h @ params["w2"] + params["b2"]
    h = bn(h, params["g2"], params["be2"], params["m2"], params["v2"])
    h = jnp.where(h >= 0, h, NEG_SLOPE * h)
    logits = h @ params["w3"] + params["b3"]
    return jax.nn.softmax(logits, axis=1)


if __name__ == "__main__":
    key = jax.random.PRNGKey(0)
    k_x, k_p = jax.random.split(key)

    B, INDIM = 8, 32
    x = jax.random.normal(k_x, (B, INDIM), jnp.float32)
    params = init_params(k_p, INDIM)
    prepped = prepare_params(params)

    out = simple_dnn_forward(x, prepped)
    out = jax.block_until_ready(out)

    assert out.shape == (B, 2)
    # softmax rows must sum to 1
    assert bool(jnp.allclose(jnp.sum(out, axis=1), 1.0, atol=1e-5))
    # match the f32 reference (bf16 matmul operands -> relaxed tolerance)
    ref = reference_forward(x, params)
    assert bool(jnp.allclose(out, ref, atol=5e-2)), float(jnp.max(jnp.abs(out - ref)))

    print("KERNEL_OK")
</pallas_src>

<mosaic_0001>
module attributes {stable_mosaic.version = 11 : i64} {
  func.func @simple_dnn_kernel(%arg0: i32, %arg1: memref<8x32xbf16, #tpu.memory_space<vmem>>, %arg2: memref<32x128xbf16, #tpu.memory_space<vmem>>, %arg3: memref<1x128xf32, #tpu.memory_space<vmem>>, %arg4: memref<128x256xbf16, #tpu.memory_space<vmem>>, %arg5: memref<1x256xf32, #tpu.memory_space<vmem>>, %arg6: memref<256x2xbf16, #tpu.memory_space<vmem>>, %arg7: memref<1x2xf32, #tpu.memory_space<vmem>>, %arg8: memref<8x2xf32, #tpu.memory_space<vmem>>) attributes {dimension_semantics = [#tpu.dimension_semantics<parallel>], iteration_bounds = array<i64: 1>, scalar_prefetch = 0 : i64, scratch_operands = 0 : i64, tpu.core_type = #tpu.core_type<tc>, window_params = [{transform_indices = @transform_0, window_bounds = array<i64: 8, 32>}, {pipeline_mode = #tpu.pipeline_mode<synchronous>, transform_indices = @transform_1, window_bounds = array<i64: 32, 128>}, {pipeline_mode = #tpu.pipeline_mode<synchronous>, transform_indices = @transform_2, window_bounds = array<i64: 1, 128>}, {pipeline_mode = #tpu.pipeline_mode<synchronous>, transform_indices = @transform_3, window_bounds = array<i64: 128, 256>}, {pipeline_mode = #tpu.pipeline_mode<synchronous>, transform_indices = @transform_4, window_bounds = array<i64: 1, 256>}, {pipeline_mode = #tpu.pipeline_mode<synchronous>, transform_indices = @transform_5, window_bounds = array<i64: 256, 2>}, {pipeline_mode = #tpu.pipeline_mode<synchronous>, transform_indices = @transform_6, window_bounds = array<i64: 1, 2>}, {transform_indices = @transform_7, window_bounds = array<i64: 8, 2>}]} {
    %c0 = arith.constant 0 : index
    %c0_0 = arith.constant 0 : index
    %0 = vector.load %arg1[%c0, %c0_0] : memref<8x32xbf16, #tpu.memory_space<vmem>>, vector<8x32xbf16>
    %c0_1 = arith.constant 0 : index
    %c0_2 = arith.constant 0 : index
    %1 = vector.load %arg2[%c0_1, %c0_2] : memref<32x128xbf16, #tpu.memory_space<vmem>>, vector<32x128xbf16>
    %cst = arith.constant dense<0.000000e+00> : vector<8x128xf32>
    %2 = tpu.matmul %0, %1, %cst {dimension_numbers = #tpu.dot_dimension_numbers<[1], [0], [0], [1], [0, 0, 1, 1], [], []>} : vector<8x32xbf16>, vector<32x128xbf16>, vector<8x128xf32> -> vector<8x128xf32>
    %c0_3 = arith.constant 0 : index
    %c0_4 = arith.constant 0 : index
    %3 = vector.load %arg3[%c0_3, %c0_4] : memref<1x128xf32, #tpu.memory_space<vmem>>, vector<1x128xf32>
    %4 = vector.broadcast %3 : vector<1x128xf32> to vector<8x128xf32>
    %5 = arith.addf %2, %4 : vector<8x128xf32>
    %cst_5 = arith.constant 0.000000e+00 : f32
    %6 = vector.broadcast %cst_5 : f32 to vector<8x128xf32>
    %7 = arith.cmpf oge, %5, %6 : vector<8x128xf32>
    %cst_6 = arith.constant 0.00999999977 : f32
    %8 = vector.broadcast %cst_6 : f32 to vector<8x128xf32>
    %9 = arith.mulf %8, %5 : vector<8x128xf32>
    %10 = arith.select %7, %5, %9 : vector<8x128xi1>, vector<8x128xf32>
    %11 = arith.truncf %10 : vector<8x128xf32> to vector<8x128xbf16>
    %c0_7 = arith.constant 0 : index
    %c0_8 = arith.constant 0 : index
    %12 = vector.load %arg4[%c0_7, %c0_8] : memref<128x256xbf16, #tpu.memory_space<vmem>>, vector<128x256xbf16>
    %cst_9 = arith.constant dense<0.000000e+00> : vector<8x256xf32>
    %13 = tpu.matmul %11, %12, %cst_9 {dimension_numbers = #tpu.dot_dimension_numbers<[1], [0], [0], [1], [0, 0, 1, 1], [], []>} : vector<8x128xbf16>, vector<128x256xbf16>, vector<8x256xf32> -> vector<8x256xf32>
    %c0_10 = arith.constant 0 : index
    %c0_11 = arith.constant 0 : index
    %14 = vector.load %arg5[%c0_10, %c0_11] : memref<1x256xf32, #tpu.memory_space<vmem>>, vector<1x256xf32>
    %15 = vector.broadcast %14 : vector<1x256xf32> to vector<8x256xf32>
    %16 = arith.addf %13, %15 : vector<8x256xf32>
    %cst_12 = arith.constant 0.000000e+00 : f32
    %17 = vector.broadcast %cst_12 : f32 to vector<8x256xf32>
    %18 = arith.cmpf oge, %16, %17 : vector<8x256xf32>
    %cst_13 = arith.constant 0.00999999977 : f32
    %19 = vector.broadcast %cst_13 : f32 to vector<8x256xf32>
    %20 = arith.mulf %19, %16 : vector<8x256xf32>
    %21 = arith.select %18, %16, %20 : vector<8x256xi1>, vector<8x256xf32>
    %22 = arith.truncf %21 : vector<8x256xf32> to vector<8x256xbf16>
    %c0_14 = arith.constant 0 : index
    %c0_15 = arith.constant 0 : index
    %23 = vector.load %arg6[%c0_14, %c0_15] : memref<256x2xbf16, #tpu.memory_space<vmem>>, vector<256x2xbf16>
    %cst_16 = arith.constant dense<0.000000e+00> : vector<8x2xf32>
    %24 = tpu.matmul %22, %23, %cst_16 {dimension_numbers = #tpu.dot_dimension_numbers<[1], [0], [0], [1], [0, 0, 1, 1], [], []>} : vector<8x256xbf16>, vector<256x2xbf16>, vector<8x2xf32> -> vector<8x2xf32>
    %c0_17 = arith.constant 0 : index
    %c0_18 = arith.constant 0 : index
    %25 = vector.load %arg7[%c0_17, %c0_18] : memref<1x2xf32, #tpu.memory_space<vmem>>, vector<1x2xf32>
    %26 = vector.broadcast %25 : vector<1x2xf32> to vector<8x2xf32>
    %27 = arith.addf %24, %26 : vector<8x2xf32>
    %cst_19 = arith.constant dense<0xFF800000> : vector<8xf32>
    %28 = vector.multi_reduction <maximumf>, %27, %cst_19 [1] : vector<8x2xf32> to vector<8xf32>
    %29 = vector.shape_cast %28 : vector<8xf32> to vector<8x1xf32>
    %30 = vector.broadcast %29 : vector<8x1xf32> to vector<8x2xf32>
    %31 = arith.subf %27, %30 : vector<8x2xf32>
    %32 = math.exp %31 : vector<8x2xf32>
    %cst_20 = arith.constant dense<0.000000e+00> : vector<8xf32>
    %33 = vector.multi_reduction <add>, %32, %cst_20 [1] : vector<8x2xf32> to vector<8xf32>
    %34 = vector.shape_cast %33 : vector<8xf32> to vector<8x1xf32>
    %35 = vector.broadcast %34 : vector<8x1xf32> to vector<8x2xf32>
    %36 = arith.divf %32, %35 : vector<8x2xf32>
    %c0_21 = arith.constant 0 : index
    %c0_22 = arith.constant 0 : index
    %37 = vector.load %arg8[%c0_21, %c0_22] : memref<8x2xf32, #tpu.memory_space<vmem>>, vector<8x2xf32>
    tpu.vector_store %arg8[%c0_21, %c0_22], %36 {strides = array<i32>} : memref<8x2xf32, #tpu.memory_space<vmem>>, vector<8x2xf32>,
    return
  }
  func.func @transform_0(%arg0: i32) -> (i32, i32) {
    %c0_i32 = arith.constant 0 : i32
    %c0_i32_0 = arith.constant 0 : i32
    return %arg0, %c0_i32 : i32, i32
  }
  func.func @transform_1(%arg0: i32) -> (i32, i32) {
    %c0_i32 = arith.constant 0 : i32
    %c0_i32_0 = arith.constant 0 : i32
    %c0_i32_1 = arith.constant 0 : i32
    return %c0_i32, %c0_i32_0 : i32, i32
  }
  func.func @transform_2(%arg0: i32) -> (i32, i32) {
    %c0_i32 = arith.constant 0 : i32
    %c0_i32_0 = arith.constant 0 : i32
    %c0_i32_1 = arith.constant 0 : i32
    return %c0_i32, %c0_i32_0 : i32, i32
  }
  func.func @transform_3(%arg0: i32) -> (i32, i32) {
    %c0_i32 = arith.constant 0 : i32
    %c0_i32_0 = arith.constant 0 : i32
    %c0_i32_1 = arith.constant 0 : i32
    return %c0_i32, %c0_i32_0 : i32, i32
  }
  func.func @transform_4(%arg0: i32) -> (i32, i32) {
    %c0_i32 = arith.constant 0 : i32
    %c0_i32_0 = arith.constant 0 : i32
    %c0_i32_1 = arith.constant 0 : i32
    return %c0_i32, %c0_i32_0 : i32, i32
  }
  func.func @transform_5(%arg0: i32) -> (i32, i32) {
    %c0_i32 = arith.constant 0 : i32
    %c0_i32_0 = arith.constant 0 : i32
    %c0_i32_1 = arith.constant 0 : i32
    return %c0_i32, %c0_i32_0 : i32, i32
  }
  func.func @transform_6(%arg0: i32) -> (i32, i32) {
    %c0_i32 = arith.constant 0 : i32
    %c0_i32_0 = arith.constant 0 : i32
    %c0_i32_1 = arith.constant 0 : i32
    return %c0_i32, %c0_i32_0 : i32, i32
  }
  func.func @transform_7(%arg0: i32) -> (i32, i32) {
    %c0_i32 = arith.constant 0 : i32
    %c0_i32_0 = arith.constant 0 : i32
    return %arg0, %c0_i32 : i32, i32
  }
}

</mosaic_0001>

<llo_original>
// kernel: simple_dnn_forward.1
$region0: #{simple_dnn_forward.1}
  #allocation0 [shape = 'u32[]', space=smem, size = 0x4, offset = 0x4, fixed_abs, tag = 'smem constant byte address 0x4 - core index']
  #allocation1 [shape = 'u32[144,128]{1,0:T(1,128)}', space=vmem, size = 0x12000, scoped, tag = 'internal scratch']
  %s0 = inlined_call_operand.vmem [shape: bf16[8,32], index: 0, kind: input, shape index: {}]
  %s1 = inlined_call_operand.vmem [shape: bf16[32,128], index: 1, kind: input, shape index: {}]
  %s2 = inlined_call_operand.vmem [shape: f32[1,128], index: 2, kind: input, shape index: {}]
  %s3 = inlined_call_operand.vmem [shape: bf16[128,256], index: 3, kind: input, shape index: {}]
  %s4 = inlined_call_operand.vmem [shape: f32[1,256], index: 4, kind: input, shape index: {}]
  %s5 = inlined_call_operand.vmem [shape: bf16[256,2], index: 5, kind: input, shape index: {}]
  %s6 = inlined_call_operand.vmem [shape: f32[1,2], index: 6, kind: input, shape index: {}]
  %s7 = inlined_call_operand.vmem [shape: f32[8,2], index: 7, kind: output, shape index: {}]
  %s8 = sld [smem:[#allocation0]]
  $region38: #{simple_dnn_forward.1} parent=0
    _
  %s10 = ssub.s32 1, %s8
  %s11 = scalar_select 0, %s10, %s8
  // Predicated region
  $region2: #{simple_dnn_forward.1} parent=0 // pred_check
    _
  $region3: #{simple_dnn_forward.1} parent=0 // pred_check_branch
    %13 = sbr.rel (0) target = $region5
  $region4: #{simple_dnn_forward.1} parent=0 // pred_region
    _
  $region5: #{simple_dnn_forward.1} parent=0 // pred_fallthru
    _
  // Predicated region
  $region6: #{simple_dnn_forward.1} parent=0 // pred_check
    _
  $region7: #{simple_dnn_forward.1} parent=0 // pred_check_branch
    %15 = sbr.rel (0) target = $region9
  $region8: #{simple_dnn_forward.1} parent=0 // pred_region
    _
  $region9: #{simple_dnn_forward.1} parent=0 // pred_fallthru
    _
  // Predicated region
  $region10: #{simple_dnn_forward.1} parent=0 // pred_check
    _
  $region11: #{simple_dnn_forward.1} parent=0 // pred_check_branch
    %17 = sbr.rel (0) target = $region13
  $region12: #{simple_dnn_forward.1} parent=0 // pred_region
    _
  $region13: #{simple_dnn_forward.1} parent=0 // pred_fallthru
    _
  // Predicated region
  $region14: #{simple_dnn_forward.1} parent=0 // pred_check
    _
  $region15: #{simple_dnn_forward.1} parent=0 // pred_check_branch
    %19 = sbr.rel (0) target = $region17
  $region16: #{simple_dnn_forward.1} parent=0 // pred_region
    _
  $region17: #{simple_dnn_forward.1} parent=0 // pred_fallthru
    _
  // Predicated region
  $region18: #{simple_dnn_forward.1} parent=0 // pred_check
    _
  $region19: #{simple_dnn_forward.1} parent=0 // pred_check_branch
    %21 = sbr.rel (0) target = $region21
  $region20: #{simple_dnn_forward.1} parent=0 // pred_region
    _
  $region21: #{simple_dnn_forward.1} parent=0 // pred_fallthru
    _
  // Predicated region
  $region22: #{simple_dnn_forward.1} parent=0 // pred_check
    _
  $region23: #{simple_dnn_forward.1} parent=0 // pred_check_branch
    %23 = sbr.rel (0) target = $region25
  $region24: #{simple_dnn_forward.1} parent=0 // pred_region
    _
  $region25: #{simple_dnn_forward.1} parent=0 // pred_fallthru
    _
  // Predicated region
  $region26: #{simple_dnn_forward.1} parent=0 // pred_check
    _
  $region27: #{simple_dnn_forward.1} parent=0 // pred_check_branch
    %25 = sbr.rel (0) target = $region29
  $region28: #{simple_dnn_forward.1} parent=0 // pred_region
    _
  $region29: #{simple_dnn_forward.1} parent=0 // pred_fallthru
    _
  %v27 = vld [vmem:[%s0] sm:$0xf]
  %v28 = vld [vmem:[%s1] sm:$0xf]
  %v29 = vld [vmem:[%s1 + $0x4] sm:$0xf]
  %v30 = vld [vmem:[%s1 + $0x8] sm:$0xf]
  %v31 = vld [vmem:[%s1 + $0xc] sm:$0xf]
  %v32 = vld [vmem:[%s2] sm:$0x1]
  %v34 = vlaneseq
  %v35 = vshrl.u32 %v34, 7
  %v36 = vsub.s32 0, %v35
  %v37 = vrot.slane %v32, %v36
  %v43 = vunpack.c.l.b16 %v28
  %v44 = vunpack.c.l.b16 %v29
  %v45 = vunpack.c.l.b16 %v30
  %v46 = vunpack.c.l.b16 %v31
  %v47 = vpack.c.b16 %v44, %v43
  %v48 = vpack.c.b16 %v46, %v45
  %vm51 = vcmask 261120
  %v53 = vsel %vm51, %v27, 0
  %55 = vmatprep.subr.bf16.mxu0 0
  %56 = vmatpush1.bf16.msra.mxu0 %v47
  %57 = vmatprep.subr.bf16.mxu0 0
  %58 = vmatpush1.bf16.msra.mxu0 %v48
  %59 = vmatprep.subr.bf16.mxu0 0
  %60 = vmatpush1.bf16.msra.mxu0 0
  %61 = vmatprep.subr.bf16.mxu0 0
  %62 = vmatpush1.bf16.msra.mxu0 0
  %63 = vmatprep.subr.bf16.mxu0 0
  %64 = vmatpush1.bf16.msra.mxu0 0
  %65 = vmatprep.subr.bf16.mxu0 0
  %66 = vmatpush1.bf16.msra.mxu0 0
  %67 = vmatprep.subr.bf16.mxu0 0
  %68 = vmatpush1.bf16.msra.mxu0 0
  %69 = vmatprep.subr.bf16.mxu0 0
  %70 = vmatpush1.bf16.msra.mxu0 0
  %71 = vmatprep.subr.bf16.mxu0 0
  %72 = vmatpush1.bf16.msra.mxu0 0
  %73 = vmatprep.subr.bf16.mxu0 0
  %74 = vmatpush1.bf16.msra.mxu0 0
  %75 = vmatprep.subr.bf16.mxu0 0
  %76 = vmatpush1.bf16.msra.mxu0 0
  %77 = vmatprep.subr.bf16.mxu0 0
  %78 = vmatpush1.bf16.msra.mxu0 0
  %79 = vmatprep.subr.bf16.mxu0 0
  %80 = vmatpush1.bf16.msra.mxu0 0
  %81 = vmatprep.subr.bf16.mxu0 0
  %82 = vmatpush1.bf16.msra.mxu0 0
  %83 = vmatprep.subr.bf16.mxu0 0
  %84 = vmatpush1.bf16.msra.mxu0 0
  %85 = vmatprep.subr.bf16.mxu0 0
  %86 = vmatpush1.bf16.msra.mxu0 0
  %87 = vmatprep.mubr.bf16.mxu0 0
  %88 = vmatmul.mubr.bf16.gmra.mrb[0].mxu0 %v53
  %v89 = vpop.f32.mrb[0].mxu0
  %v90 = vadd.f32 %v37, %v89
  %v91 = vpop.f32.mrb[0].mxu0
  %v92 = vpop.f32.mrb[0].mxu0
  %v93 = vpop.f32.mrb[0].mxu0
  %94 = vdwg.mxu0
  %vm95 = vcmp.ge.f32.partialorder %v90, 0.0
  %v96 = vmul.f32 %v90, 0.01
  %v97 = vsel %vm95, %v90, %v96
  %v98 = vpack.c.bf16 %v97, %v97
  %v99 = vld [vmem:[%s3] sm:$0xff]
  %v100 = vld [vmem:[%s3 + $0x8] sm:$0xff]
  %v101 = vld [vmem:[%s3 + $0x10] sm:$0xff]
  %v102 = vld [vmem:[%s3 + $0x18] sm:$0xff]
  %v103 = vld [vmem:[%s3 + $0x20] sm:$0xff]
  %v104 = vld [vmem:[%s3 + $0x28] sm:$0xff]
  %v105 = vld [vmem:[%s3 + $0x30] sm:$0xff]
  %v106 = vld [vmem:[%s3 + $0x38] sm:$0xff]
  %v107 = vld [vmem:[%s3 + $0x40] sm:$0xff]
  %v108 = vld [vmem:[%s3 + $0x48] sm:$0xff]
  %v109 = vld [vmem:[%s3 + $0x50] sm:$0xff]
  %v110 = vld [vmem:[%s3 + $0x58] sm:$0xff]
  %v111 = vld [vmem:[%s3 + $0x60] sm:$0xff]
  %v112 = vld [vmem:[%s3 + $0x68] sm:$0xff]
  %v113 = vld [vmem:[%s3 + $0x70] sm:$0xff]
  %v114 = vld [vmem:[%s3 + $0x78] sm:$0xff]
  %v115 = vld [vmem:[%s4] sm:$0x3]
  %v117 = vlaneseq
  %v118 = vshrl.u32 %v117, 7
  %v119 = vsub.s32 0, %v118
  %v120 = vrot.slane %v115, %v119
  %v121 = vlaneseq
  %v122 = vshrl.u32 %v121, 7
  %v123 = vsub.s32 1, %v122
  %v124 = vrot.slane %v115, %v123
  %v143 = vunpack.c.l.b16 %v99
  %v144 = vunpack.c.h.b16 %v99
  %v145 = vunpack.c.l.b16 %v100
  %v146 = vunpack.c.h.b16 %v100
  %v147 = vunpack.c.l.b16 %v101
  %v148 = vunpack.c.h.b16 %v101
  %v149 = vunpack.c.l.b16 %v102
  %v150 = vunpack.c.h.b16 %v102
  %v151 = vunpack.c.l.b16 %v103
  %v152 = vunpack.c.h.b16 %v103
  %v153 = vunpack.c.l.b16 %v104
  %v154 = vunpack.c.h.b16 %v104
  %v155 = vunpack.c.l.b16 %v105
  %v156 = vunpack.c.h.b16 %v105
  %v157 = vunpack.c.l.b16 %v106
  %v158 = vunpack.c.h.b16 %v106
  %v159 = vunpack.c.l.b16 %v107
  %v160 = vunpack.c.h.b16 %v107
  %v161 = vunpack.c.l.b16 %v108
  %v162 = vunpack.c.h.b16 %v108
  %v163 = vunpack.c.l.b16 %v109
  %v164 = vunpack.c.h.b16 %v109
  %v165 = vunpack.c.l.b16 %v110
  %v166 = vunpack.c.h.b16 %v110
  %v167 = vunpack.c.l.b16 %v111
  %v168 = vunpack.c.h.b16 %v111
  %v169 = vunpack.c.l.b16 %v112
  %v170 = vunpack.c.h.b16 %v112
  %v171 = vunpack.c.l.b16 %v113
  %v172 = vunpack.c.h.b16 %v113
  %v173 = vunpack.c.l.b16 %v114
  %v174 = vunpack.c.h.b16 %v114
  %v175 = vpack.c.b16 %v145, %v143
  %v176 = vpack.c.b16 %v146, %v144
  %v177 = vpack.c.b16 %v149, %v147
  %v178 = vpack.c.b16 %v150, %v148
  %v179 = vpack.c.b16 %v153, %v151
  %v180 = vpack.c.b16 %v154, %v152
  %v181 = vpack.c.b16 %v157, %v155
  %v182 = vpack.c.b16 %v158, %v156
  %v183 = vpack.c.b16 %v161, %v159
  %v184 = vpack.c.b16 %v162, %v160
  %v185 = vpack.c.b16 %v165, %v163
  %v186 = vpack.c.b16 %v166, %v164
  %v187 = vpack.c.b16 %v169, %v167
  %v188 = vpack.c.b16 %v170, %v168
  %v189 = vpack.c.b16 %v173, %v171
  %v190 = vpack.c.b16 %v174, %v172
  %207 = vmatprep.subr.bf16.mxu0 %v176
  %208 = vmatpush1.bf16.msra.mxu0 %v175
  %209 = vmatprep.subr.bf16.mxu0 %v178
  %210 = vmatpush1.bf16.msra.mxu0 %v177
  %211 = vmatprep.subr.bf16.mxu0 %v180
  %212 = vmatpush1.bf16.msra.mxu0 %v179
  %213 = vmatprep.subr.bf16.mxu0 %v182
  %214 = vmatpush1.bf16.msra.mxu0 %v181
  %215 = vmatprep.subr.bf16.mxu0 %v184
  %216 = vmatpush1.bf16.msra.mxu0 %v183
  %217 = vmatprep.subr.bf16.mxu0 %v186
  %218 = vmatpush1.bf16.msra.mxu0 %v185
  %219 = vmatprep.subr.bf16.mxu0 %v188
  %220 = vmatpush1.bf16.msra.mxu0 %v187
  %221 = vmatprep.subr.bf16.mxu0 %v190
  %222 = vmatpush1.bf16.msra.mxu0 %v189
  %223 = vmatprep.subr.bf16.mxu0 0
  %224 = vmatpush1.bf16.msra.mxu0 0
  %225 = vmatprep.subr.bf16.mxu0 0
  %226 = vmatpush1.bf16.msra.mxu0 0
  %227 = vmatprep.subr.bf16.mxu0 0
  %228 = vmatpush1.bf16.msra.mxu0 0
  %229 = vmatprep.subr.bf16.mxu0 0
  %230 = vmatpush1.bf16.msra.mxu0 0
  %231 = vmatprep.subr.bf16.mxu0 0
  %232 = vmatpush1.bf16.msra.mxu0 0
  %233 = vmatprep.subr.bf16.mxu0 0
  %234 = vmatpush1.bf16.msra.mxu0 0
  %235 = vmatprep.subr.bf16.mxu0 0
  %236 = vmatpush1.bf16.msra.mxu0 0
  %237 = vmatprep.subr.bf16.mxu0 0
  %238 = vmatpush1.bf16.msra.mxu0 0
  %239 = vmatprep.mubr.bf16.mxu0 0
  %240 = vmatmul.mubr.bf16.gmra.mrb[0].mxu0 %v98
  %v241 = vpop.f32.mrb[0].mxu0
  %v242 = vadd.f32 %v120, %v241
  %v243 = vpop.f32.mrb[0].mxu0
  %v244 = vadd.f32 %v124, %v243
  %v245 = vpop.f32.mrb[0].mxu0
  %v246 = vpop.f32.mrb[0].mxu0
  %247 = vdwg.mxu0
  %vm248 = vcmp.ge.f32.partialorder %v242, 0.0
  %vm249 = vcmp.ge.f32.partialorder %v244, 0.0
  %v250 = vmul.f32 %v242, 0.01
  %v251 = vmul.f32 %v244, 0.01
  %v252 = vsel %vm248, %v242, %v250
  %v253 = vsel %vm249, %v244, %v251
  %v254 = vpack.c.bf16 %v252, %v252
  %v255 = vpack.c.bf16 %v253, %v253
  %v256 = vld [vmem:[%s5] sm:$0xf]
  %v257 = vld [vmem:[%s5 + $0x4] sm:$0xf]
  %v258 = vld [vmem:[%s5 + $0x8] sm:$0xf]
  %v259 = vld [vmem:[%s5 + $0xc] sm:$0xf]
  %v260 = vld [vmem:[%s5 + $0x10] sm:$0xf]
  %v261 = vld [vmem:[%s5 + $0x14] sm:$0xf]
  %v262 = vld [vmem:[%s5 + $0x18] sm:$0xf]
  %v263 = vld [vmem:[%s5 + $0x1c] sm:$0xf]
  %v264 = vld [vmem:[%s5 + $0x20] sm:$0xf]
  %v265 = vld [vmem:[%s5 + $0x24] sm:$0xf]
  %v266 = vld [vmem:[%s5 + $0x28] sm:$0xf]
  %v267 = vld [vmem:[%s5 + $0x2c] sm:$0xf]
  %v268 = vld [vmem:[%s5 + $0x30] sm:$0xf]
  %v269 = vld [vmem:[%s5 + $0x34] sm:$0xf]
  %v270 = vld [vmem:[%s5 + $0x38] sm:$0xf]
  %v271 = vld [vmem:[%s5 + $0x3c] sm:$0xf]
  %v272 = vld [vmem:[%s5 + $0x40] sm:$0xf]
  %v273 = vld [vmem:[%s5 + $0x44] sm:$0xf]
  %v274 = vld [vmem:[%s5 + $0x48] sm:$0xf]
  %v275 = vld [vmem:[%s5 + $0x4c] sm:$0xf]
  %v276 = vld [vmem:[%s5 + $0x50] sm:$0xf]
  %v277 = vld [vmem:[%s5 + $0x54] sm:$0xf]
  %v278 = vld [vmem:[%s5 + $0x58] sm:$0xf]
  %v279 = vld [vmem:[%s5 + $0x5c] sm:$0xf]
  %v280 = vld [vmem:[%s5 + $0x60] sm:$0xf]
  %v281 = vld [vmem:[%s5 + $0x64] sm:$0xf]
  %v282 = vld [vmem:[%s5 + $0x68] sm:$0xf]
  %v283 = vld [vmem:[%s5 + $0x6c] sm:$0xf]
  %v284 = vld [vmem:[%s5 + $0x70] sm:$0xf]
  %v285 = vld [vmem:[%s5 + $0x74] sm:$0xf]
  %v286 = vld [vmem:[%s5 + $0x78] sm:$0xf]
  %v287 = vld [vmem:[%s5 + $0x7c] sm:$0xf]
  %v288 = vld [vmem:[%s6] sm:$0x1]
  %v290 = vlaneseq
  %v291 = vshrl.u32 %v290, 7
  %v292 = vsub.s32 0, %v291
  %v293 = vrot.slane %v288, %v292
  %v327 = vunpack.c.l.b16 %v256
  %v328 = vunpack.c.l.b16 %v257
  %v329 = vunpack.c.l.b16 %v258
  %v330 = vunpack.c.l.b16 %v259
  %v331 = vunpack.c.l.b16 %v260
  %v332 = vunpack.c.l.b16 %v261
  %v333 = vunpack.c.l.b16 %v262
  %v334 = vunpack.c.l.b16 %v263
  %v335 = vunpack.c.l.b16 %v264
  %v336 = vunpack.c.l.b16 %v265
  %v337 = vunpack.c.l.b16 %v266
  %v338 = vunpack.c.l.b16 %v267
  %v339 = vunpack.c.l.b16 %v268
  %v340 = vunpack.c.l.b16 %v269
  %v341 = vunpack.c.l.b16 %v270
  %v342 = vunpack.c.l.b16 %v271
  %v343 = vunpack.c.l.b16 %v272
  %v344 = vunpack.c.l.b16 %v273
  %v345 = vunpack.c.l.b16 %v274
  %v346 = vunpack.c.l.b16 %v275
  %v347 = vunpack.c.l.b16 %v276
  %v348 = vunpack.c.l.b16 %v277
  %v349 = vunpack.c.l.b16 %v278
  %v350 = vunpack.c.l.b16 %v279
  %v351 = vunpack.c.l.b16 %v280
  %v352 = vunpack.c.l.b16 %v281
  %v353 = vunpack.c.l.b16 %v282
  %v354 = vunpack.c.l.b16 %v283
  %v355 = vunpack.c.l.b16 %v284
  %v356 = vunpack.c.l.b16 %v285
  %v357 = vunpack.c.l.b16 %v286
  %v358 = vunpack.c.l.b16 %v287
  %v359 = vpack.c.b16 %v328, %v327
  %v360 = vpack.c.b16 %v330, %v329
  %v361 = vpack.c.b16 %v332, %v331
  %v362 = vpack.c.b16 %v334, %v333
  %v363 = vpack.c.b16 %v336, %v335
  %v364 = vpack.c.b16 %v338, %v337
  %v365 = vpack.c.b16 %v340, %v339
  %v366 = vpack.c.b16 %v342, %v341
  %v367 = vpack.c.b16 %v344, %v343
  %v368 = vpack.c.b16 %v346, %v345
  %v369 = vpack.c.b16 %v348, %v347
  %v370 = vpack.c.b16 %v350, %v349
  %v371 = vpack.c.b16 %v352, %v351
  %v372 = vpack.c.b16 %v354, %v353
  %v373 = vpack.c.b16 %v356, %v355
  %v374 = vpack.c.b16 %v358, %v357
  %391 = vmatprep.subr.bf16.mxu0 0
  %392 = vmatpush1.bf16.msra.mxu0 %v359
  %393 = vmatprep.subr.bf16.mxu0 0
  %394 = vmatpush1.bf16.msra.mxu0 %v360
  %395 = vmatprep.subr.bf16.mxu0 0
  %396 = vmatpush1.bf16.msra.mxu0 %v361
  %397 = vmatprep.subr.bf16.mxu0 0
  %398 = vmatpush1.bf16.msra.mxu0 %v362
  %399 = vmatprep.subr.bf16.mxu0 0
  %400 = vmatpush1.bf16.msra.mxu0 %v363
  %401 = vmatprep.subr.bf16.mxu0 0
  %402 = vmatpush1.bf16.msra.mxu0 %v364
  %403 = vmatprep.subr.bf16.mxu0 0
  %404 = vmatpush1.bf16.msra.mxu0 %v365
  %405 = vmatprep.subr.bf16.mxu0 0
  %406 = vmatpush1.bf16.msra.mxu0 %v366
  %407 = vmatprep.subr.bf16.mxu0 0
  %408 = vmatpush1.bf16.msra.mxu0 %v367
  %409 = vmatprep.subr.bf16.mxu0 0
  %410 = vmatpush1.bf16.msra.mxu0 %v368
  %411 = vmatprep.subr.bf16.mxu0 0
  %412 = vmatpush1.bf16.msra.mxu0 %v369
  %413 = vmatprep.subr.bf16.mxu0 0
  %414 = vmatpush1.bf16.msra.mxu0 %v370
  %415 = vmatprep.subr.bf16.mxu0 0
  %416 = vmatpush1.bf16.msra.mxu0 %v371
  %417 = vmatprep.subr.bf16.mxu0 0
  %418 = vmatpush1.bf16.msra.mxu0 %v372
  %419 = vmatprep.subr.bf16.mxu0 0
  %420 = vmatpush1.bf16.msra.mxu0 %v373
  %421 = vmatprep.subr.bf16.mxu0 0
  %422 = vmatpush1.bf16.msra.mxu0 %v374
  %423 = vmatprep.mubr.bf16.mxu0 %v255
  %424 = vmatmul.mubr.bf16.gmra.mrb[0].mxu0 %v254
  %v425 = vpop.f32.mrb[0].mxu0
  %v426 = vadd.f32 %v293, %v425
  %v427 = vpop.f32.mrb[0].mxu0
  %v428 = vpop.f32.mrb[0].mxu0
  %v429 = vpop.f32.mrb[0].mxu0
  %430 = vdwg.mxu0
  %vm431 = vcmask 15360
  %v432 = vsel %vm431, %v426, -inf
  %433 = vmax.xlane.f32.xlu0 %v432
  %v434 = vpop.xlane.xlu0 %433
  %v435 = vsub.f32 %v426, %v434
  %v436 = vmul.f32 %v435, 1.442695
  %v437 = vpow.pop %v436
  %v438 = vsel %vm431, %v437, 0.0
  %439 = vadd.xlane.f32.xlu0 %v438
  %v440 = vpop.xlane.xlu0 %439
  %v441 = vrcp.pop %v440
  %v442 = vmul.f32 %v437, %v441
  %443 = vst.msk [vmem:[%s7] sm:$0xff] %vm431, %v442
  // Predicated region
  $region30: #{simple_dnn_forward.1} parent=0 // pred_check
    _
  $region31: #{simple_dnn_forward.1} parent=0 // pred_check_branch
    %445 = sbr.rel (0) target = $region33
  $region32: #{simple_dnn_forward.1} parent=0 // pred_region
    _
  $region33: #{simple_dnn_forward.1} parent=0 // pred_fallthru
    _
  // Predicated region
  $region34: #{simple_dnn_forward.1} parent=0 // pred_check
    _
  $region35: #{simple_dnn_forward.1} parent=0 // pred_check_branch
    %447 = sbr.rel (0) target = $region37
  $region36: #{simple_dnn_forward.1} parent=0 // pred_region
    _
  $region37: #{simple_dnn_forward.1} parent=0 // pred_fallthru
    _

</llo_original>
